<compile_context>
chip_gen: v7x
topology: tpu7x:2x2x1
jax: 0.10.0
libtpu: 0.0.40
codegen_flags: <defaults>
</compile_context>

<pallas_src>
import jax
import jax.numpy as jnp
from jax import lax
from jax.experimental import pallas as pl
from jax.experimental.pallas import tpu as pltpu


# -----------------------------------------------------------------------------
# Model configuration
# -----------------------------------------------------------------------------
R = 2                      # number of regions
L_K = (4, 4)               # latent dim per region
L = sum(L_K)               # total observed latent dim
IIR_ORDER = 2              # history order
D = L * (1 + IIR_ORDER)    # packed dense multi-region state dim
N_K = (16, 16)             # neurons per region
NT = sum(N_K)              # total neurons
U = 3                      # input dim


# -----------------------------------------------------------------------------
# Kernel 1: fused input_mod + likelihood_pdf.get_local_update
#   u_lik = u @ W_lik + b_lik                      [M, NT]
#   u_dyn = u @ W_dyn                              [M, L]
#   k     = y @ W_k_y + u_lik @ W_k_u              [M, L]   (block-diag per region)
# -----------------------------------------------------------------------------
def _prep_kernel(u_ref, y_ref, wl_ref, bl_ref, wd_ref, wky_ref, wku_ref,
                 ulik_ref, udyn_ref, k_ref):
    u = u_ref[...]
    ulik = jnp.dot(u, wl_ref[...], preferred_element_type=jnp.float32) + bl_ref[...]
    ulik_ref[...] = ulik
    udyn_ref[...] = jnp.dot(u, wd_ref[...], preferred_element_type=jnp.float32)
    k_ref[...] = (
        jnp.dot(y_ref[...], wky_ref[...], preferred_element_type=jnp.float32)
        + jnp.dot(ulik, wku_ref[...], preferred_element_type=jnp.float32)
    )


def prep_pallas(u_flat, y_flat, W_lik, b_lik, W_dyn, W_k_y, W_k_u):
    M = u_flat.shape[0]
    return pl.pallas_call(
        _prep_kernel,
        out_shape=(
            jax.ShapeDtypeStruct((M, NT), jnp.float32),   # u_lik
            jax.ShapeDtypeStruct((M, L), jnp.float32),    # u_dyn
            jax.ShapeDtypeStruct((M, L), jnp.float32),    # k
        ),
    )(u_flat, y_flat, W_lik, b_lik, W_dyn, W_k_y, W_k_u)


# -----------------------------------------------------------------------------
# Kernel 2: sequential nonlinear filter (single invocation, unrolled time loop)
#   m_t = tanh(m_{t-1} @ A) + pad_to_D(u_dyn_t + k_t)
# Only the recurrence lives here; sampling / kl are computed elsewhere.
# -----------------------------------------------------------------------------
def _filter_kernel(u_ref, k_ref, A_ref, m0_ref, m_out_ref):
    T, B, Ldim = u_ref.shape
    Ddim = A_ref.shape[0]
    A = A_ref[...]
    zero_tail = jnp.zeros((B, Ddim - Ldim), jnp.float32)
    m_init = jnp.broadcast_to(m0_ref[...], (B, Ddim))

    def body(t, m_prev):
        pred = jnp.tanh(jnp.dot(m_prev, A, preferred_element_type=jnp.float32))
        upd = jnp.concatenate([u_ref[t] + k_ref[t], zero_tail], axis=-1)
        m_t = pred + upd
        m_out_ref[t] = m_t
        return m_t

    lax.fori_loop(0, T, body, m_init, unroll=True)


def filter_pallas(u_tm, k_tm, A, m0):
    # u_tm, k_tm : [T, B, L] -> m : [T, B, D]
    T, B, _ = u_tm.shape
    return pl.pallas_call(
        _filter_kernel,
        out_shape=jax.ShapeDtypeStruct((T, B, D), jnp.float32),
    )(u_tm, k_tm, A, m0)


# -----------------------------------------------------------------------------
# Kernel 3: sampling + Poisson expected log-likelihood, grid over samples
#   z_s      = m + sqrt(Q) * eps_s                         (written as [S,B,T,D])
#   log_rate = z_s[..., :L] @ C_blockdiag + b + u_lik
#   ell_s    = sum_n ( y * log_rate - exp(min(log_rate, 30)) )   -> [S, B, T]
# y / u_lik / m blocks are re-used for every sample (index_map ignores s).
# -----------------------------------------------------------------------------
def _sample_ell_kernel(m_ref, eps_ref, qs_ref, y_ref, ul_ref, c_ref, b_ref,
                       z_ref, ell_ref):
    B, T, Ddim = m_ref.shape
    Ldim, Ntot = c_ref.shape

    z = m_ref[...] + qs_ref[...][None] * eps_ref[0]            # [B, T, D]
    z_ref[0] = z

    z_K = z[..., :Ldim].reshape(B * T, Ldim)
    lr = jnp.dot(z_K, c_ref[...],
                 preferred_element_type=jnp.float32).reshape(B, T, Ntot)
    lr = lr + b_ref[...] + ul_ref[...]
    rate = jnp.exp(jnp.minimum(lr, 30.0))                      # clamp: guard f32 overflow
    ell_ref[0] = jnp.sum(y_ref[...] * lr - rate, axis=-1)      # [B, T]


def sample_ell_pallas(m_btd, eps, q_sqrt, y_cat, u_lik_btn, C_bd, b_read, S):
    B, T, Ddim = m_btd.shape
    # TODO(synk): at production S*B*T sizes, add row-tiling over (B,T) and an explicit
    # vmem_limit_bytes so the kernel stays within v7x's 64 MiB VMEM.
    return pl.pallas_call(
        _sample_ell_kernel,
        out_shape=(
            jax.ShapeDtypeStruct((S, B, T, Ddim), jnp.float32),   # samples z
            jax.ShapeDtypeStruct((S, B, T), jnp.float32),         # per-sample ell
        ),
        grid_spec=pltpu.PrefetchScalarGridSpec(
            num_scalar_prefetch=0,
            grid=(S,),
            in_specs=[
                pl.BlockSpec((B, T, Ddim), lambda s: (0, 0, 0)),      # m (shared)
                pl.BlockSpec((1, B, T, Ddim), lambda s: (s, 0, 0, 0)),# eps_s
                pl.BlockSpec((1, Ddim), lambda s: (0, 0)),            # sqrt(Q)
                pl.BlockSpec((B, T, NT), lambda s: (0, 0, 0)),        # y (shared)
                pl.BlockSpec((B, T, NT), lambda s: (0, 0, 0)),        # u_lik (shared)
                pl.BlockSpec((L, NT), lambda s: (0, 0)),              # C block-diag
                pl.BlockSpec((1, NT), lambda s: (0, 0)),              # b_read
            ],
            out_specs=(
                pl.BlockSpec((1, B, T, Ddim), lambda s: (s, 0, 0, 0)),
                pl.BlockSpec((1, B, T), lambda s: (s, 0, 0)),
            ),
        ),
        compiler_params=pltpu.CompilerParams(
            dimension_semantics=("parallel",),   # samples are independent (v7x dual-TC)
        ),
    )(m_btd, eps, q_sqrt, y_cat, u_lik_btn, C_bd, b_read)


# -----------------------------------------------------------------------------
# Deterministic parameter init + fused (concatenated / block-diagonal) weights
# -----------------------------------------------------------------------------
def init_params(key):
    ks = jax.random.split(key, 16)
    p = {}
    # input_mod
    p["W_lik"] = [0.1 * jax.random.normal(ks[0 + r], (U, N_K[r])) for r in range(R)]
    p["b_lik"] = [0.05 * jax.random.normal(ks[2 + r], (1, N_K[r])) for r in range(R)]
    p["W_dyn"] = [0.1 * jax.random.normal(ks[4 + r], (U, L_K[r])) for r in range(R)]
    # likelihood_pdf (low-rank Poisson readout + local-update map)
    p["C_read"] = [0.2 * jax.random.normal(ks[6 + r], (L_K[r], N_K[r])) for r in range(R)]
    p["b_read"] = [jnp.full((1, N_K[r]), -1.0, jnp.float32) for r in range(R)]
    p["W_k"] = [0.05 * jax.random.normal(ks[8 + r], (2 * N_K[r], L_K[r])) for r in range(R)]
    # dynamics_mod / initial_c_pdf
    p["A"] = 0.9 / D * jax.random.normal(ks[10], (D, D))
    p["Q_sqrt"] = 0.1 * jnp.ones((1, D), jnp.float32)
    p["m0"] = jnp.zeros((1, D), jnp.float32)
    return jax.tree_util.tree_map(lambda a: a.astype(jnp.float32), p)


def fuse_params(p):
    """Concatenate / block-diagonalize per-region weights so each stage is one kernel."""
    W_k_y = jnp.zeros((NT, L), jnp.float32)
    W_k_u = jnp.zeros((NT, L), jnp.float32)
    C_bd = jnp.zeros((L, NT), jnp.float32)
    n_off, l_off = 0, 0
    for r in range(R):
        n_r, l_r = N_K[r], L_K[r]
        W_k_y = W_k_y.at[n_off:n_off + n_r, l_off:l_off + l_r].set(p["W_k"][r][:n_r])
        W_k_u = W_k_u.at[n_off:n_off + n_r, l_off:l_off + l_r].set(p["W_k"][r][n_r:])
        C_bd = C_bd.at[l_off:l_off + l_r, n_off:n_off + n_r].set(p["C_read"][r])
        n_off += n_r
        l_off += l_r
    return {
        "W_lik": jnp.concatenate(p["W_lik"], axis=1),     # [U, NT]
        "b_lik": jnp.concatenate(p["b_lik"], axis=1),     # [1, NT]
        "W_dyn": jnp.concatenate(p["W_dyn"], axis=1),     # [U, L]
        "W_k_y": W_k_y,                                   # [NT, L]
        "W_k_u": W_k_u,                                   # [NT, L]
        "C_bd": C_bd,                                     # [L, NT]
        "b_read": jnp.concatenate(p["b_read"], axis=1),   # [1, NT]
    }


def precompute_norm_const(y):
    """gammaln(y+1) depends only on the data -> hoisted out of forward (compute once)."""
    return sum(
        jnp.sum(jax.scipy.special.gammaln(yr.astype(jnp.float32) + 1.0), axis=-1)
        for yr in y
    )                                                      # [B, T]


# -----------------------------------------------------------------------------
# Forward pass (mirrors LowRankNonlinearStateSpaceModelWithInput.forward)
# -----------------------------------------------------------------------------
def forward(params, fused, y, u_K, n_samples, sample_key, norm_const, p_mask_a=0.0):
    del p_mask_a  # p_mask_a = 0.0 in this synthetic setup
    B, T, _ = y[0].shape
    S = n_samples
    M = B * T

    u_flat = u_K.reshape(M, U).astype(jnp.float32)
    y_cat = jnp.concatenate([yr.astype(jnp.float32) for yr in y], axis=-1)   # [B, T, NT]
    y_flat = y_cat.reshape(M, NT)

    # ---- input_mod + likelihood_pdf.get_local_update (ONE fused Pallas kernel) ----
    # TODO(synk): the low-rank precision update K of the real likelihood_pdf is not
    # reproducible without its definition; this synthetic filter consumes only k.
    u_lik_flat, u_dyn_flat, k_flat = prep_pallas(
        u_flat, y_flat, fused["W_lik"], fused["b_lik"], fused["W_dyn"],
        fused["W_k_y"], fused["W_k_u"],
    )

    # synthetic KL statistic: depends only on k, so it lives off the sequential path
    kl = 0.5 * jnp.sum(k_flat ** 2, axis=-1).reshape(B, T)                   # [B, T]

    # time-major [T, B, L] for the recurrence (tiny, not S-scaled)
    u_tm = u_dyn_flat.reshape(B, T, L).transpose(1, 0, 2)
    k_tm = k_flat.reshape(B, T, L).transpose(1, 0, 2)

    # ---- nl_filter : sequential smoother (single-invocation Pallas recurrence) ----
    m_tm = filter_pallas(u_tm, k_tm, params["A"], params["m0"])              # [T, B, D]
    m_btd = jnp.transpose(m_tm, (1, 0, 2))                                   # [B, T, D]

    # ---- sampling + likelihood_pdf.get_ell (one Pallas kernel, parallel over S) ----
    eps = jax.random.normal(sample_key, (S, B, T, D), jnp.float32)
    u_lik_btn = u_lik_flat.reshape(B, T, NT)
    z_s, ell_sbt = sample_ell_pallas(
        m_btd, eps, params["Q_sqrt"], y_cat, u_lik_btn,
        fused["C_bd"], fused["b_read"], S,
    )                                                                        # [S,B,T,D], [S,B,T]

    ell = jnp.mean(ell_sbt, axis=0) - norm_const                             # [B, T]

    # ---- loss ----
    loss = jnp.mean(jnp.sum(kl - ell, axis=-1))

    # ---- dynamics.unpack_dense_multiregion_state ----
    z_K_s = z_s[..., :L]                                                     # [S,B,T,L]
    H_KK_s = z_s[..., L:].reshape(S, B, T, IIR_ORDER, L)                     # [S,B,T,iir,L]

    z_out = {"z_K": z_K_s, "H_KK": H_KK_s, "s_K": z_s}
    stats = {"kl": kl}
    return loss, z_out, stats


# -----------------------------------------------------------------------------
if __name__ == "__main__":
    key = jax.random.PRNGKey(0)
    k_param, k_y0, k_y1, k_u, k_sample = jax.random.split(key, 5)

    params = init_params(k_param)
    fused = fuse_params(params)

    B, T = 2, 8
    n_samples = 4
    y = (
        jax.random.poisson(k_y0, lam=2.0, shape=(B, T, N_K[0])).astype(jnp.float32),
        jax.random.poisson(k_y1, lam=2.0, shape=(B, T, N_K[1])).astype(jnp.float32),
    )
    u_K = jax.random.normal(k_u, (B, T, U), jnp.float32)
    norm_const = precompute_norm_const(y)

    loss, z_s, stats = forward(params, fused, y, u_K, n_samples, k_sample, norm_const)
    jax.block_until_ready((loss, z_s, stats))

    assert loss.shape == ()
    assert jnp.isfinite(loss)
    assert z_s["z_K"].shape == (n_samples, B, T, L)
    assert z_s["H_KK"].shape == (n_samples, B, T, IIR_ORDER, L)
    assert z_s["s_K"].shape == (n_samples, B, T, D)
    assert stats["kl"].shape == (B, T)
    print("KERNEL_OK")
</pallas_src>

<mosaic_0001>
module attributes {stable_mosaic.version = 11 : i64} {
  func.func @_prep_kernel(%arg0: memref<16x3xf32, #tpu.memory_space<vmem>>, %arg1: memref<16x32xf32, #tpu.memory_space<vmem>>, %arg2: memref<3x32xf32, #tpu.memory_space<vmem>>, %arg3: memref<1x32xf32, #tpu.memory_space<vmem>>, %arg4: memref<3x8xf32, #tpu.memory_space<vmem>>, %arg5: memref<32x8xf32, #tpu.memory_space<vmem>>, %arg6: memref<32x8xf32, #tpu.memory_space<vmem>>, %arg7: memref<16x32xf32, #tpu.memory_space<vmem>>, %arg8: memref<16x8xf32, #tpu.memory_space<vmem>>, %arg9: memref<16x8xf32, #tpu.memory_space<vmem>>) attributes {dimension_semantics = [], scalar_prefetch = 0 : i64, scratch_operands = 0 : i64, tpu.core_type = #tpu.core_type<tc>} {
    %c0 = arith.constant 0 : index
    %c0_0 = arith.constant 0 : index
    %0 = vector.load %arg0[%c0, %c0_0] : memref<16x3xf32, #tpu.memory_space<vmem>>, vector<16x3xf32>
    %c0_1 = arith.constant 0 : index
    %c0_2 = arith.constant 0 : index
    %1 = vector.load %arg2[%c0_1, %c0_2] : memref<3x32xf32, #tpu.memory_space<vmem>>, vector<3x32xf32>
    %cst = arith.constant dense<0.000000e+00> : vector<16x32xf32>
    %2 = tpu.matmul %0, %1, %cst {dimension_numbers = #tpu.dot_dimension_numbers<[1], [0], [0], [1], [0, 0, 1, 1], [], []>} : vector<16x3xf32>, vector<3x32xf32>, vector<16x32xf32> -> vector<16x32xf32>
    %c0_3 = arith.constant 0 : index
    %c0_4 = arith.constant 0 : index
    %3 = vector.load %arg3[%c0_3, %c0_4] : memref<1x32xf32, #tpu.memory_space<vmem>>, vector<1x32xf32>
    %4 = vector.broadcast %3 : vector<1x32xf32> to vector<16x32xf32>
    %5 = arith.addf %2, %4 : vector<16x32xf32>
    %c0_5 = arith.constant 0 : index
    %c0_6 = arith.constant 0 : index
    %6 = vector.load %arg7[%c0_5, %c0_6] : memref<16x32xf32, #tpu.memory_space<vmem>>, vector<16x32xf32>
    tpu.vector_store %arg7[%c0_5, %c0_6], %5 {strides = array<i32>} : memref<16x32xf32, #tpu.memory_space<vmem>>, vector<16x32xf32>,
    %c0_7 = arith.constant 0 : index
    %c0_8 = arith.constant 0 : index
    %7 = vector.load %arg4[%c0_7, %c0_8] : memref<3x8xf32, #tpu.memory_space<vmem>>, vector<3x8xf32>
    %cst_9 = arith.constant dense<0.000000e+00> : vector<16x8xf32>
    %8 = tpu.matmul %0, %7, %cst_9 {dimension_numbers = #tpu.dot_dimension_numbers<[1], [0], [0], [1], [0, 0, 1, 1], [], []>} : vector<16x3xf32>, vector<3x8xf32>, vector<16x8xf32> -> vector<16x8xf32>
    %c0_10 = arith.constant 0 : index
    %c0_11 = arith.constant 0 : index
    %9 = vector.load %arg8[%c0_10, %c0_11] : memref<16x8xf32, #tpu.memory_space<vmem>>, vector<16x8xf32>
    tpu.vector_store %arg8[%c0_10, %c0_11], %8 {strides = array<i32>} : memref<16x8xf32, #tpu.memory_space<vmem>>, vector<16x8xf32>,
    %c0_12 = arith.constant 0 : index
    %c0_13 = arith.constant 0 : index
    %10 = vector.load %arg1[%c0_12, %c0_13] : memref<16x32xf32, #tpu.memory_space<vmem>>, vector<16x32xf32>
    %c0_14 = arith.constant 0 : index
    %c0_15 = arith.constant 0 : index
    %11 = vector.load %arg5[%c0_14, %c0_15] : memref<32x8xf32, #tpu.memory_space<vmem>>, vector<32x8xf32>
    %cst_16 = arith.constant dense<0.000000e+00> : vector<16x8xf32>
    %12 = tpu.matmul %10, %11, %cst_16 {dimension_numbers = #tpu.dot_dimension_numbers<[1], [0], [0], [1], [0, 0, 1, 1], [], []>} : vector<16x32xf32>, vector<32x8xf32>, vector<16x8xf32> -> vector<16x8xf32>
    %c0_17 = arith.constant 0 : index
    %c0_18 = arith.constant 0 : index
    %13 = vector.load %arg6[%c0_17, %c0_18] : memref<32x8xf32, #tpu.memory_space<vmem>>, vector<32x8xf32>
    %cst_19 = arith.constant dense<0.000000e+00> : vector<16x8xf32>
    %14 = tpu.matmul %5, %13, %cst_19 {dimension_numbers = #tpu.dot_dimension_numbers<[1], [0], [0], [1], [0, 0, 1, 1], [], []>} : vector<16x32xf32>, vector<32x8xf32>, vector<16x8xf32> -> vector<16x8xf32>
    %15 = arith.addf %12, %14 : vector<16x8xf32>
    %c0_20 = arith.constant 0 : index
    %c0_21 = arith.constant 0 : index
    %16 = vector.load %arg9[%c0_20, %c0_21] : memref<16x8xf32, #tpu.memory_space<vmem>>, vector<16x8xf32>
    tpu.vector_store %arg9[%c0_20, %c0_21], %15 {strides = array<i32>} : memref<16x8xf32, #tpu.memory_space<vmem>>, vector<16x8xf32>,
    return
  }
}

</mosaic_0001>

<llo_original>
// kernel: tpu_custom_call.1
$region0: #{tpu_custom_call.1}
  #allocation0 [shape = 'u32[]', space=smem, size = 0x4, offset = 0x4, fixed_abs, tag = 'smem constant byte address 0x4 - core index']
  #allocation1 [shape = 'u32[144,128]{1,0:T(1,128)}', space=vmem, size = 0x12000, scoped, tag = 'internal scratch']
  %s0 = inlined_call_operand.vmem [shape: f32[16,3], index: 0, kind: input, shape index: {}]
  %s1 = inlined_call_operand.vmem [shape: f32[16,32], index: 1, kind: input, shape index: {}]
  %s2 = inlined_call_operand.vmem [shape: f32[3,32], index: 2, kind: input, shape index: {}]
  %s3 = inlined_call_operand.vmem [shape: f32[1,32], index: 3, kind: input, shape index: {}]
  %s4 = inlined_call_operand.vmem [shape: f32[3,8], index: 4, kind: input, shape index: {}]
  %s5 = inlined_call_operand.vmem [shape: f32[32,8], index: 5, kind: input, shape index: {}]
  %s6 = inlined_call_operand.vmem [shape: f32[32,8], index: 6, kind: input, shape index: {}]
  %s7 = inlined_call_operand.hbm [shape: f32[16,32], index: 7, kind: output, shape index: {0}]
  %s8 = inlined_call_operand.vmem [shape: f32[16,8], index: 8, kind: output, shape index: {1}]
  %s9 = inlined_call_operand.vmem [shape: f32[16,8], index: 9, kind: output, shape index: {2}]
  %10 = xla_tuple %s7, %s8, %s9
  %s11 = sld [smem:[#allocation0]]
  $region54: #{tpu_custom_call.1} parent=0
    _
  %s13 = ssub.s32 1, %s11
  %s14 = scalar_select 0, %s13, %s11
  $region1: #{tpu_custom_call.1} parent=0
    #allocation2 [shape = 'u8[8192]{0}', space=vmem, size = 0x2000, scoped, tag = 'output window, operand 0, single buffered']
    #allocation3 [shape = 's32[1]{0}', space=sflag, size = 0x4, scoped, tag = 'scoped memory for tpu_custom_call.1']
    %15 = vsyncpa [#allocation3], 0
    // Predicated region
    $region2: #{tpu_custom_call.1} parent=1 // pred_check
      _
    $region3: #{tpu_custom_call.1} parent=1 // pred_check_branch
      %17 = sbr.rel (0) target = $region5
    $region4: #{tpu_custom_call.1} parent=1 // pred_region
      _
    $region5: #{tpu_custom_call.1} parent=1 // pred_fallthru
      _
    // Predicated region
    $region6: #{tpu_custom_call.1} parent=1 // pred_check
      _
    $region7: #{tpu_custom_call.1} parent=1 // pred_check_branch
      %19 = sbr.rel (0) target = $region9
    $region8: #{tpu_custom_call.1} parent=1 // pred_region
      _
    $region9: #{tpu_custom_call.1} parent=1 // pred_fallthru
      _
    // Predicated region
    $region10: #{tpu_custom_call.1} parent=1 // pred_check
      _
    $region11: #{tpu_custom_call.1} parent=1 // pred_check_branch
      %21 = sbr.rel (0) target = $region13
    $region12: #{tpu_custom_call.1} parent=1 // pred_region
      _
    $region13: #{tpu_custom_call.1} parent=1 // pred_fallthru
      _
    // Predicated region
    $region14: #{tpu_custom_call.1} parent=1 // pred_check
      _
    $region15: #{tpu_custom_call.1} parent=1 // pred_check_branch
      %23 = sbr.rel (0) target = $region17
    $region16: #{tpu_custom_call.1} parent=1 // pred_region
      _
    $region17: #{tpu_custom_call.1} parent=1 // pred_fallthru
      _
    // Predicated region
    $region18: #{tpu_custom_call.1} parent=1 // pred_check
      _
    $region19: #{tpu_custom_call.1} parent=1 // pred_check_branch
      %25 = sbr.rel (0) target = $region21
    $region20: #{tpu_custom_call.1} parent=1 // pred_region
      _
    $region21: #{tpu_custom_call.1} parent=1 // pred_fallthru
      _
    // Predicated region
    $region22: #{tpu_custom_call.1} parent=1 // pred_check
      _
    $region23: #{tpu_custom_call.1} parent=1 // pred_check_branch
      %27 = sbr.rel (0) target = $region25
    $region24: #{tpu_custom_call.1} parent=1 // pred_region
      _
    $region25: #{tpu_custom_call.1} parent=1 // pred_fallthru
      _
    // Predicated region
    $region26: #{tpu_custom_call.1} parent=1 // pred_check
      _
    $region27: #{tpu_custom_call.1} parent=1 // pred_check_branch
      %29 = sbr.rel (0) target = $region29
    $region28: #{tpu_custom_call.1} parent=1 // pred_region
      _
    $region29: #{tpu_custom_call.1} parent=1 // pred_fallthru
      _
    %v30 = vld [vmem:[%s0] sm:$0xff]
    %v31 = vld [vmem:[%s0 + $0x8] sm:$0xff]
    %v32 = vld [vmem:[%s2] sm:$0x7]
    %v33 = vld [vmem:[%s3] sm:$0x1]
    %v35 = vlaneseq
    %v36 = vshrl.u32 %v35, 7
    %v37 = vsub.s32 0, %v36
    %v38 = vrot.slane %v33, %v37
    %vm40 = vcmask 23552
    %v42 = vsel %vm40, %v30, 0
    %v45 = vsel %vm40, %v31, 0
    %vm47 = vcmask 1042432
    %v49 = vsel %vm47, %v32, 0
    %51 = vmatprep.subr.mxu0 0.0
    %52 = vmatpush1.msra.mxu0 %v49
    %53 = vmatprep.subr.mxu0 0.0
    %54 = vmatpush1.msra.mxu0 0.0
    %55 = vmatprep.subr.mxu0 0.0
    %56 = vmatpush1.msra.mxu0 0.0
    %57 = vmatprep.subr.mxu0 0.0
    %58 = vmatpush1.msra.mxu0 0.0
    %59 = vmatprep.subr.mxu0 0.0
    %60 = vmatpush1.msra.mxu0 0.0
    %61 = vmatprep.subr.mxu0 0.0
    %62 = vmatpush1.msra.mxu0 0.0
    %63 = vmatprep.subr.mxu0 0.0
    %64 = vmatpush1.msra.mxu0 0.0
    %65 = vmatprep.subr.mxu0 0.0
    %66 = vmatpush1.msra.mxu0 0.0
    %67 = vmatprep.subr.mxu0 0.0
    %68 = vmatpush1.msra.mxu0 0.0
    %69 = vmatprep.subr.mxu0 0.0
    %70 = vmatpush1.msra.mxu0 0.0
    %71 = vmatprep.subr.mxu0 0.0
    %72 = vmatpush1.msra.mxu0 0.0
    %73 = vmatprep.subr.mxu0 0.0
    %74 = vmatpush1.msra.mxu0 0.0
    %75 = vmatprep.subr.mxu0 0.0
    %76 = vmatpush1.msra.mxu0 0.0
    %77 = vmatprep.subr.mxu0 0.0
    %78 = vmatpush1.msra.mxu0 0.0
    %79 = vmatprep.subr.mxu0 0.0
    %80 = vmatpush1.msra.mxu0 0.0
    %81 = vmatprep.subr.mxu0 0.0
    %82 = vmatpush1.msra.mxu0 0.0
    %83 = vmatprep.subr.mxu0 0.0
    %84 = vmatpush1.msra.mxu0 0.0
    %85 = vmatprep.subr.mxu0 0.0
    %86 = vmatpush1.msra.mxu0 0.0
    %87 = vmatprep.subr.mxu0 0.0
    %88 = vmatpush1.msra.mxu0 0.0
    %89 = vmatprep.subr.mxu0 0.0
    %90 = vmatpush1.msra.mxu0 0.0
    %91 = vmatprep.subr.mxu0 0.0
    %92 = vmatpush1.msra.mxu0 0.0
    %93 = vmatprep.subr.mxu0 0.0
    %94 = vmatpush1.msra.mxu0 0.0
    %95 = vmatprep.subr.mxu0 0.0
    %96 = vmatpush1.msra.mxu0 0.0
    %97 = vmatprep.subr.mxu0 0.0
    %98 = vmatpush1.msra.mxu0 0.0
    %99 = vmatprep.subr.mxu0 0.0
    %100 = vmatpush1.msra.mxu0 0.0
    %101 = vmatprep.subr.mxu0 0.0
    %102 = vmatpush1.msra.mxu0 0.0
    %103 = vmatprep.subr.mxu0 0.0
    %104 = vmatpush1.msra.mxu0 0.0
    %105 = vmatprep.subr.mxu0 0.0
    %106 = vmatpush1.msra.mxu0 0.0
    %107 = vmatprep.subr.mxu0 0.0
    %108 = vmatpush1.msra.mxu0 0.0
    %109 = vmatprep.subr.mxu0 0.0
    %110 = vmatpush1.msra.mxu0 0.0
    %111 = vmatprep.subr.mxu0 0.0
    %112 = vmatpush1.msra.mxu0 0.0
    %113 = vmatprep.subr.mxu0 0.0
    %114 = vmatpush1.msra.mxu0 0.0
    %115 = vmatprep.mubr.f32.mxu0 0.0
    %116 = vmatmul.mubr.f32.gmra.mrb[0].mxu0 %v42
    %v117 = vpop.f32.mrb[0].mxu0
    %v118 = vadd.f32 %v38, %v117
    %v119 = vpop.f32.mrb[0].mxu0
    %120 = vmatprep.mubr.f32.mxu0 0.0
    %121 = vmatmul.mubr.f32.gmra.mrb[0].mxu0 %v45
    %v122 = vpop.f32.mrb[0].mxu0
    %v123 = vadd.f32 %v38, %v122
    %v124 = vpop.f32.mrb[0].mxu0
    %125 = vdwg.mxu0
    %vm126 = vcmask 261120
    %127 = vst.msk [vmem:[#allocation2] sm:$0xff] %vm126, %v118
    %128 = vst.msk [vmem:[#allocation2 + $0x8] sm:$0xff] %vm126, %v123
    %v129 = vld [vmem:[%s4] sm:$0x7]
    %v131 = vsel %vm47, %v129, 0
    %133 = vmatprep.subr.mxu0 0.0
    %134 = vmatpush1.msra.mxu0 %v131
    %135 = vmatprep.subr.mxu0 0.0
    %136 = vmatpush1.msra.mxu0 0.0
    %137 = vmatprep.subr.mxu0 0.0
    %138 = vmatpush1.msra.mxu0 0.0
    %139 = vmatprep.subr.mxu0 0.0
    %140 = vmatpush1.msra.mxu0 0.0
    %141 = vmatprep.subr.mxu0 0.0
    %142 = vmatpush1.msra.mxu0 0.0
    %143 = vmatprep.subr.mxu0 0.0
    %144 = vmatpush1.msra.mxu0 0.0
    %145 = vmatprep.subr.mxu0 0.0
    %146 = vmatpush1.msra.mxu0 0.0
    %147 = vmatprep.subr.mxu0 0.0
    %148 = vmatpush1.msra.mxu0 0.0
    %149 = vmatprep.subr.mxu0 0.0
    %150 = vmatpush1.msra.mxu0 0.0
    %151 = vmatprep.subr.mxu0 0.0
    %152 = vmatpush1.msra.mxu0 0.0
    %153 = vmatprep.subr.mxu0 0.0
    %154 = vmatpush1.msra.mxu0 0.0
    %155 = vmatprep.subr.mxu0 0.0
    %156 = vmatpush1.msra.mxu0 0.0
    %157 = vmatprep.subr.mxu0 0.0
    %158 = vmatpush1.msra.mxu0 0.0
    %159 = vmatprep.subr.mxu0 0.0
    %160 = vmatpush1.msra.mxu0 0.0
    %161 = vmatprep.subr.mxu0 0.0
    %162 = vmatpush1.msra.mxu0 0.0
    %163 = vmatprep.subr.mxu0 0.0
    %164 = vmatpush1.msra.mxu0 0.0
    %165 = vmatprep.subr.mxu0 0.0
    %166 = vmatpush1.msra.mxu0 0.0
    %167 = vmatprep.subr.mxu0 0.0
    %168 = vmatpush1.msra.mxu0 0.0
    %169 = vmatprep.subr.mxu0 0.0
    %170 = vmatpush1.msra.mxu0 0.0
    %171 = vmatprep.subr.mxu0 0.0
    %172 = vmatpush1.msra.mxu0 0.0
    %173 = vmatprep.subr.mxu0 0.0
    %174 = vmatpush1.msra.mxu0 0.0
    %175 = vmatprep.subr.mxu0 0.0
    %176 = vmatpush1.msra.mxu0 0.0
    %177 = vmatprep.subr.mxu0 0.0
    %178 = vmatpush1.msra.mxu0 0.0
    %179 = vmatprep.subr.mxu0 0.0
    %180 = vmatpush1.msra.mxu0 0.0
    %181 = vmatprep.subr.mxu0 0.0
    %182 = vmatpush1.msra.mxu0 0.0
    %183 = vmatprep.subr.mxu0 0.0
    %184 = vmatpush1.msra.mxu0 0.0
    %185 = vmatprep.subr.mxu0 0.0
    %186 = vmatpush1.msra.mxu0 0.0
    %187 = vmatprep.subr.mxu0 0.0
    %188 = vmatpush1.msra.mxu0 0.0
    %189 = vmatprep.subr.mxu0 0.0
    %190 = vmatpush1.msra.mxu0 0.0
    %191 = vmatprep.subr.mxu0 0.0
    %192 = vmatpush1.msra.mxu0 0.0
    %193 = vmatprep.subr.mxu0 0.0
    %194 = vmatpush1.msra.mxu0 0.0
    %195 = vmatprep.subr.mxu0 0.0
    %196 = vmatpush1.msra.mxu0 0.0
    %197 = vmatprep.mubr.f32.mxu0 0.0
    %198 = vmatmul.mubr.f32.gmra.mrb[0].mxu0 %v42
    %v199 = vpop.f32.mrb[0].mxu0
    %v200 = vadd.f32 0.0, %v199
    %v201 = vpop.f32.mrb[0].mxu0
    %202 = vmatprep.mubr.f32.mxu0 0.0
    %203 = vmatmul.mubr.f32.gmra.mrb[0].mxu0 %v45
    %v204 = vpop.f32.mrb[0].mxu0
    %v205 = vadd.f32 0.0, %v204
    %v206 = vpop.f32.mrb[0].mxu0
    %207 = vdwg.mxu0
    %vm208 = vcmask 64512
    %209 = vst.msk [vmem:[%s8] sm:$0xff] %vm208, %v200
    %210 = vst.msk [vmem:[%s8 + $0x8] sm:$0xff] %vm208, %v205
    %v211 = vld [vmem:[%s1] sm:$0xff]
    %v212 = vld [vmem:[%s1 + $0x8] sm:$0xff]
    %v213 = vld [vmem:[%s5] sm:$0xff]
    %v214 = vld [vmem:[%s5 + $0x8] sm:$0xff]
    %v215 = vld [vmem:[%s5 + $0x10] sm:$0xff]
    %v216 = vld [vmem:[%s5 + $0x18] sm:$0xff]
    %v217 = vld [vmem:[%s6] sm:$0xff]
    %v218 = vld [vmem:[%s6 + $0x8] sm:$0xff]
    %v219 = vld [vmem:[%s6 + $0x10] sm:$0xff]
    %v220 = vld [vmem:[%s6 + $0x18] sm:$0xff]
    %v222 = vsel %vm126, %v118, 0
    %v225 = vsel %vm126, %v123, 0
    %227 = vmatprep.subr.mxu0 0.0
    %228 = vmatpush1.msra.mxu0 %v217
    %229 = vmatprep.subr.mxu0 0.0
    %230 = vmatpush1.msra.mxu0 %v218
    %231 = vmatprep.subr.mxu0 0.0
    %232 = vmatpush1.msra.mxu0 %v219
    %233 = vmatprep.subr.mxu0 0.0
    %234 = vmatpush1.msra.mxu0 %v220
    %235 = vmatprep.subr.mxu0 0.0
    %236 = vmatpush1.msra.mxu0 0.0
    %237 = vmatprep.subr.mxu0 0.0
    %238 = vmatpush1.msra.mxu0 0.0
    %239 = vmatprep.subr.mxu0 0.0
    %240 = vmatpush1.msra.mxu0 0.0
    %241 = vmatprep.subr.mxu0 0.0
    %242 = vmatpush1.msra.mxu0 0.0
    %243 = vmatprep.subr.mxu0 0.0
    %244 = vmatpush1.msra.mxu0 0.0
    %245 = vmatprep.subr.mxu0 0.0
    %246 = vmatpush1.msra.mxu0 0.0
    %247 = vmatprep.subr.mxu0 0.0
    %248 = vmatpush1.msra.mxu0 0.0
    %249 = vmatprep.subr.mxu0 0.0
    %250 = vmatpush1.msra.mxu0 0.0
    %251 = vmatprep.subr.mxu0 0.0
    %252 = vmatpush1.msra.mxu0 0.0
    %253 = vmatprep.subr.mxu0 0.0
    %254 = vmatpush1.msra.mxu0 0.0
    %255 = vmatprep.subr.mxu0 0.0
    %256 = vmatpush1.msra.mxu0 0.0
    %257 = vmatprep.subr.mxu0 0.0
    %258 = vmatpush1.msra.mxu0 0.0
    %259 = vmatprep.subr.mxu0 0.0
    %260 = vmatpush1.msra.mxu0 0.0
    %261 = vmatprep.subr.mxu0 0.0
    %262 = vmatpush1.msra.mxu0 0.0
    %263 = vmatprep.subr.mxu0 0.0
    %264 = vmatpush1.msra.mxu0 0.0
    %265 = vmatprep.subr.mxu0 0.0
    %266 = vmatpush1.msra.mxu0 0.0
    %267 = vmatprep.subr.mxu0 0.0
    %268 = vmatpush1.msra.mxu0 0.0
    %269 = vmatprep.subr.mxu0 0.0
    %270 = vmatpush1.msra.mxu0 0.0
    %271 = vmatprep.subr.mxu0 0.0
    %272 = vmatpush1.msra.mxu0 0.0
    %273 = vmatprep.subr.mxu0 0.0
    %274 = vmatpush1.msra.mxu0 0.0
    %275 = vmatprep.subr.mxu0 0.0
    %276 = vmatpush1.msra.mxu0 0.0
    %277 = vmatprep.subr.mxu0 0.0
    %278 = vmatpush1.msra.mxu0 0.0
    %279 = vmatprep.subr.mxu0 0.0
    %280 = vmatpush1.msra.mxu0 0.0
    %281 = vmatprep.subr.mxu0 0.0
    %282 = vmatpush1.msra.mxu0 0.0
    %283 = vmatprep.subr.mxu0 0.0
    %284 = vmatpush1.msra.mxu0 0.0
    %285 = vmatprep.subr.mxu0 0.0
    %286 = vmatpush1.msra.mxu0 0.0
    %287 = vmatprep.subr.mxu0 0.0
    %288 = vmatpush1.msra.mxu0 0.0
    %289 = vmatprep.subr.mxu0 0.0
    %290 = vmatpush1.msra.mxu0 0.0
    %291 = vmatprep.mubr.f32.mxu0 0.0
    %292 = vmatmul.mubr.f32.gmra.mrb[0].mxu0 %v222
    %v293 = vpop.f32.mrb[0].mxu0
    %v294 = vadd.f32 0.0, %v293
    %v295 = vpop.f32.mrb[0].mxu0
    %296 = vmatprep.mubr.f32.mxu0 0.0
    %297 = vmatmul.mubr.f32.gmra.mrb[0].mxu0 %v225
    %v298 = vpop.f32.mrb[0].mxu0
    %v299 = vadd.f32 0.0, %v298
    %v300 = vpop.f32.mrb[0].mxu0
    %301 = vdwg.mxu0
    %v303 = vsel %vm126, %v211, 0
    %v306 = vsel %vm126, %v212, 0
    %308 = vmatprep.subr.mxu0 0.0
    %309 = vmatpush1.msra.mxu0 %v213
    %310 = vmatprep.subr.mxu0 0.0
    %311 = vmatpush1.msra.mxu0 %v214
    %312 = vmatprep.subr.mxu0 0.0
    %313 = vmatpush1.msra.mxu0 %v215
    %314 = vmatprep.subr.mxu0 0.0
    %315 = vmatpush1.msra.mxu0 %v216
    %316 = vmatprep.subr.mxu0 0.0
    %317 = vmatpush1.msra.mxu0 0.0
    %318 = vmatprep.subr.mxu0 0.0
    %319 = vmatpush1.msra.mxu0 0.0
    %320 = vmatprep.subr.mxu0 0.0
    %321 = vmatpush1.msra.mxu0 0.0
    %322 = vmatprep.subr.mxu0 0.0
    %323 = vmatpush1.msra.mxu0 0.0
    %324 = vmatprep.subr.mxu0 0.0
    %325 = vmatpush1.msra.mxu0 0.0
    %326 = vmatprep.subr.mxu0 0.0
    %327 = vmatpush1.msra.mxu0 0.0
    %328 = vmatprep.subr.mxu0 0.0
    %329 = vmatpush1.msra.mxu0 0.0
    %330 = vmatprep.subr.mxu0 0.0
    %331 = vmatpush1.msra.mxu0 0.0
    %332 = vmatprep.subr.mxu0 0.0
    %333 = vmatpush1.msra.mxu0 0.0
    %334 = vmatprep.subr.mxu0 0.0
    %335 = vmatpush1.msra.mxu0 0.0
    %336 = vmatprep.subr.mxu0 0.0
    %337 = vmatpush1.msra.mxu0 0.0
    %338 = vmatprep.subr.mxu0 0.0
    %339 = vmatpush1.msra.mxu0 0.0
    %340 = vmatprep.subr.mxu0 0.0
    %341 = vmatpush1.msra.mxu0 0.0
    %342 = vmatprep.subr.mxu0 0.0
    %343 = vmatpush1.msra.mxu0 0.0
    %344 = vmatprep.subr.mxu0 0.0
    %345 = vmatpush1.msra.mxu0 0.0
    %346 = vmatprep.subr.mxu0 0.0
    %347 = vmatpush1.msra.mxu0 0.0
    %348 = vmatprep.subr.mxu0 0.0
    %349 = vmatpush1.msra.mxu0 0.0
    %350 = vmatprep.subr.mxu0 0.0
    %351 = vmatpush1.msra.mxu0 0.0
    %352 = vmatprep.subr.mxu0 0.0
    %353 = vmatpush1.msra.mxu0 0.0
    %354 = vmatprep.subr.mxu0 0.0
    %355 = vmatpush1.msra.mxu0 0.0
    %356 = vmatprep.subr.mxu0 0.0
    %357 = vmatpush1.msra.mxu0 0.0
    %358 = vmatprep.subr.mxu0 0.0
    %359 = vmatpush1.msra.mxu0 0.0
    %360 = vmatprep.subr.mxu0 0.0
    %361 = vmatpush1.msra.mxu0 0.0
    %362 = vmatprep.subr.mxu0 0.0
    %363 = vmatpush1.msra.mxu0 0.0
    %364 = vmatprep.subr.mxu0 0.0
    %365 = vmatpush1.msra.mxu0 0.0
    %366 = vmatprep.subr.mxu0 0.0
    %367 = vmatpush1.msra.mxu0 0.0
    %368 = vmatprep.subr.mxu0 0.0
    %369 = vmatpush1.msra.mxu0 0.0
    %370 = vmatprep.subr.mxu0 0.0
    %371 = vmatpush1.msra.mxu0 0.0
    %372 = vmatprep.mubr.f32.mxu0 0.0
    %373 = vmatmul.mubr.f32.gmra.mrb[0].mxu0 %v303
    %v374 = vpop.f32.mrb[0].mxu0
    %v375 = vadd.f32 %v294, %v374
    %v376 = vpop.f32.mrb[0].mxu0
    %377 = vmatprep.mubr.f32.mxu0 0.0
    %378 = vmatmul.mubr.f32.gmra.mrb[0].mxu0 %v306
    %v379 = vpop.f32.mrb[0].mxu0
    %v380 = vadd.f32 %v299, %v379
    %v381 = vpop.f32.mrb[0].mxu0
    %382 = vdwg.mxu0
    %383 = vst.msk [vmem:[%s9] sm:$0xff] %vm208, %v375
    %384 = vst.msk [vmem:[%s9 + $0x8] sm:$0xff] %vm208, %v380
    // Predicated region
    $region30: #{tpu_custom_call.1} parent=1 // pred_check
      _
    $region31: #{tpu_custom_call.1} parent=1 // pred_check_branch
      %386 = sbr.rel (0) target = $region33
    $region32: #{tpu_custom_call.1} parent=1 // pred_region
      %s388 = ssub.s32 256, 256
      %389 = vsyncadd [#allocation3], %s388
      %s390 = sshll.u32 [#allocation2], 4
      %s391 = int_to_ptr.vmem [resolvable:$true] %s390
      %396 = dma.vmem_to_hbm [thread:$0]  %s391, 256, %s7, [#allocation3], 128, 128, 8
    $region33: #{tpu_custom_call.1} parent=1 // pred_fallthru
      _
    // Predicated region
    $region34: #{tpu_custom_call.1} parent=1 // pred_check
      _
    $region35: #{tpu_custom_call.1} parent=1 // pred_check_branch
      %398 = sbr.rel (0) target = $region37
    $region36: #{tpu_custom_call.1} parent=1 // pred_region
      _
    $region37: #{tpu_custom_call.1} parent=1 // pred_fallthru
      _
    // Predicated region
    $region38: #{tpu_custom_call.1} parent=1 // pred_check
      _
    $region39: #{tpu_custom_call.1} parent=1 // pred_check_branch
      %400 = sbr.rel (0) target = $region41
    $region40: #{tpu_custom_call.1} parent=1 // pred_region
      _
    $region41: #{tpu_custom_call.1} parent=1 // pred_fallthru
      _
    // Predicated region
    $region42: #{tpu_custom_call.1} parent=1 // pred_check
      _
    $region43: #{tpu_custom_call.1} parent=1 // pred_check_branch
      %402 = sbr.rel (0) target = $region45
    $region44: #{tpu_custom_call.1} parent=1 // pred_region
      %403 = dma.done [#allocation3], 256
    $region45: #{tpu_custom_call.1} parent=1 // pred_fallthru
      _
    // Predicated region
    $region46: #{tpu_custom_call.1} parent=1 // pred_check
      _
    $region47: #{tpu_custom_call.1} parent=1 // pred_check_branch
      %405 = sbr.rel (0) target = $region49
    $region48: #{tpu_custom_call.1} parent=1 // pred_region
      _
    $region49: #{tpu_custom_call.1} parent=1 // pred_fallthru
      _
    // Predicated region
    $region50: #{tpu_custom_call.1} parent=1 // pred_check
      _
    $region51: #{tpu_custom_call.1} parent=1 // pred_check_branch
      %407 = sbr.rel (0) target = $region53
    $region52: #{tpu_custom_call.1} parent=1 // pred_region
      _
    $region53: #{tpu_custom_call.1} parent=1 // pred_fallthru
      _
    %408 = vsyncpa [#allocation3], 1

</llo_original>
